<compile_context>
chip_gen: v7x
topology: tpu7x:2x2x1
jax: 0.10.0
libtpu: 0.0.40
codegen_flags: <defaults>
</compile_context>

<pallas_src>
import functools

import jax
import jax.numpy as jnp
from jax.experimental import pallas as pl
from jax.experimental.pallas import tpu as pltpu

LANES = 128                      # vreg lane width; last dim of every block
SUBLANES = 8                     # f32 sublane tile; accumulator height
TAIL_ALIGN = SUBLANES * LANES    # 1024: Pallas head length is a multiple of this
ROW_ALIGN = 32                   # multi-tile block rows: dense for f32/bf16/int8


def _cdiv(a, b):
    return -(-a // b)


def _round_up(a, m):
    return _cdiv(a, m) * m


def _chip_defaults():
    """(num_splits, max_tile_rows, vmem_limit_bytes) tuned per TPU generation."""
    kind = ""
    try:
        kind = jax.devices()[0].device_kind.lower()
    except Exception:
        pass
    if "v7" in kind or "tpu7" in kind:
        # 2 TensorCores (split the grid across them) but only 64 MiB VMEM / core.
        num_splits, max_rows, vmem_limit = 2, 8192, 48 * 1024 * 1024
    else:
        # v5e / v6e: single TensorCore, 128 MiB physical VMEM.
        num_splits, max_rows, vmem_limit = 1, 8192, 64 * 1024 * 1024
    try:
        cap = pltpu.get_tpu_info().vmem_capacity_bytes
        vmem_limit = min(vmem_limit, int(cap * 3 // 4))
    except Exception:
        pass
    return num_splits, max_rows, vmem_limit


def _l1_sum_kernel(a_ref, b_ref, o_ref, *, rows, block_rows, mask_possible):
    # o_ref is this split's (8, LANES) f32 accumulator; its block index is constant
    # along the sequential axis so it stays resident in VMEM across the reduction.
    c = pl.program_id(0)
    i = pl.program_id(1)

    @pl.when(i == 0)
    def _init():
        o_ref[...] = jnp.zeros_like(o_ref)

    diff = a_ref[...].astype(jnp.float32) - b_ref[...].astype(jnp.float32)
    absdiff = jnp.abs(diff)

    nfold = block_rows // SUBLANES  # block_rows is always a multiple of 8

    def fold(x):
        # Free retiling reshape + pure VPU vreg adds (no XLU cross-lane work).
        return x.reshape(nfold, SUBLANES, LANES).sum(axis=0)

    if not mask_possible:
        o_ref[...] += fold(absdiff)
    else:
        # Intended (unclamped) row offset of this tile; the index_map clamps the
        # DMA so it never starts out of bounds, and we zero duplicated / ragged
        # rows here by comparing against the unclamped offset.
        start_row = (c * pl.num_programs(1) + i) * block_rows
        needs_mask = start_row + block_rows > rows

        @pl.when(jnp.logical_not(needs_mask))
        def _plain():
            o_ref[...] += fold(absdiff)

        @pl.when(needs_mask)
        def _masked():
            row_ids = start_row + jax.lax.broadcasted_iota(
                jnp.int32, absdiff.shape, 0)
            o_ref[...] += fold(jnp.where(row_ids < rows, absdiff, 0.0))


def euclidean_loss(predicted_landmarks, target_landmarks, *,
                   min_pallas_elems=65536, max_tile_rows=None, num_splits=None):
    assert predicted_landmarks.shape == target_landmarks.shape
    out_dtype = jnp.result_type(predicted_landmarks.dtype, target_landmarks.dtype)

    n = predicted_landmarks.size
    if n == 0:
        return jnp.zeros((), out_dtype)

    # Small inputs: pallas_call launch/pipeline overhead dominates -> plain XLA.
    if n < min_pallas_elems:
        return jnp.sum(jnp.abs(predicted_landmarks - target_landmarks)).astype(out_dtype)

    a = predicted_landmarks.reshape(-1)   # flatten is free (bitcast)
    b = target_landmarks.reshape(-1)

    # Pad-free tail handling: the Pallas kernel consumes the 1024-aligned head
    # (rows is then a multiple of 8, so the in-kernel sublane fold is exact); the
    # <1024-element tail is one tiny XLA reduction. No full-array jnp.pad copy;
    # XLA may still materialize the head slice, but never reads/writes padding.
    rem = n % TAIL_ALIGN
    n_head = n - rem
    if rem:
        tail = jnp.sum(jnp.abs(a[n_head:].astype(jnp.float32) -
                               b[n_head:].astype(jnp.float32)))
    else:
        tail = jnp.zeros((), jnp.float32)
    if n_head == 0:
        return tail.astype(out_dtype)

    def_splits, def_rows, vmem_limit = _chip_defaults()
    if num_splits is None:
        num_splits = def_splits
    if max_tile_rows is None:
        max_tile_rows = def_rows

    # Keep (2 inputs x 2 pipeline buffers) well inside the scoped-VMEM limit.
    itemsize = max(jnp.dtype(a.dtype).itemsize, jnp.dtype(b.dtype).itemsize)
    per_buf = (vmem_limit // 2) // 4
    rows_cap = max(ROW_ALIGN, (per_buf // (LANES * itemsize)) // ROW_ALIGN * ROW_ALIGN)
    max_tile_rows = max(ROW_ALIGN, min(max_tile_rows, rows_cap))

    rows = n_head // LANES                         # multiple of 8 by construction
    a2 = (a[:n_head] if rem else a).reshape(rows, LANES)
    b2 = (b[:n_head] if rem else b).reshape(rows, LANES)

    # Block selection: as large as possible (up to max_tile_rows), multiple of
    # ROW_ALIGN; if one block covers everything, use a single full-extent block.
    block_rows = min(max_tile_rows, _round_up(_cdiv(rows, num_splits), ROW_ALIGN))
    if block_rows >= rows:
        num_splits = 1
        block_rows = rows                          # full extent; still % 8 == 0

    total_tiles = _cdiv(rows, block_rows)
    tiles_per_split = _cdiv(total_tiles, num_splits)
    last_tile = total_tiles - 1
    # Masking needed whenever (splits x tiles x block_rows) coverage overruns rows.
    mask_possible = (num_splits * tiles_per_split * block_rows) != rows

    def in_map(c, i):
        # Clamp so DMAs never start fully out of bounds; the kernel masks by the
        # intended (unclamped) row index, so clamped duplicates contribute 0.
        return (jnp.minimum(c * tiles_per_split + i, last_tile), 0)

    kernel = functools.partial(
        _l1_sum_kernel, rows=rows, block_rows=block_rows, mask_possible=mask_possible
    )

    partials = pl.pallas_call(
        kernel,
        out_shape=jax.ShapeDtypeStruct((num_splits * SUBLANES, LANES), jnp.float32),
        grid_spec=pltpu.PrefetchScalarGridSpec(
            num_scalar_prefetch=0,
            grid=(num_splits, tiles_per_split),
            in_specs=[
                pl.BlockSpec((block_rows, LANES), in_map),
                pl.BlockSpec((block_rows, LANES), in_map),
            ],
            out_specs=pl.BlockSpec((SUBLANES, LANES), lambda c, i: (c, 0)),
        ),
        compiler_params=pltpu.CompilerParams(
            dimension_semantics=("parallel", "arbitrary"),
            vmem_limit_bytes=vmem_limit,
        ),
    )(a2, b2)

    # Single cross-lane reduction, once, on the tiny (num_splits*8, 128) partials.
    return (jnp.sum(partials) + tail).astype(out_dtype)


if __name__ == "__main__":
    key = jax.random.PRNGKey(0)
    ks = jax.random.split(key, 8)

    def ref(x, y):
        return jnp.sum(jnp.abs(x - y))

    # Case 1: canonical small landmark tensor (batch=2, 68 landmarks, 2 coords)
    # -> default threshold takes the fused-XLA small-input path.
    p1 = jax.random.normal(ks[0], (2, 68, 2), dtype=jnp.float32)
    t1 = jax.random.normal(ks[1], (2, 68, 2), dtype=jnp.float32)
    o1 = euclidean_loss(p1, t1)
    jax.block_until_ready(o1)
    assert jnp.allclose(o1, ref(p1, t1), rtol=1e-5, atol=1e-4), (o1, ref(p1, t1))

    # Case 2: non-128-multiple size forced through Pallas (exercises the pad-free
    # 1024-aligned head + tiny XLA tail).
    p2 = jax.random.normal(ks[2], (3, 129, 67), dtype=jnp.float32)
    t2 = jax.random.normal(ks[3], (3, 129, 67), dtype=jnp.float32)
    o2 = euclidean_loss(p2, t2, min_pallas_elems=0)
    jax.block_until_ready(o2)
    assert jnp.allclose(o2, ref(p2, t2), rtol=1e-4, atol=1e-2), (o2, ref(p2, t2))

    # Case 3: aligned multi-tile path (small max_tile_rows override so the grid has
    # several sequential steps and the (8,128) resident accumulator is exercised).
    p3 = jax.random.normal(ks[4], (4, 96, 128), dtype=jnp.float32)
    t3 = jax.random.normal(ks[5], (4, 96, 128), dtype=jnp.float32)
    o3 = euclidean_loss(p3, t3, min_pallas_elems=0, max_tile_rows=64)
    jax.block_until_ready(o3)
    assert jnp.allclose(o3, ref(p3, t3), rtol=1e-4, atol=1e-2), (o3, ref(p3, t3))

    # Case 4: ragged multi-tile (last tile partially out of bounds -> gated
    # in-kernel row mask; clamped duplicate tiles on multi-core splits).
    p4 = jax.random.normal(ks[6], (4, 100, 128), dtype=jnp.float32)
    t4 = jax.random.normal(ks[7], (4, 100, 128), dtype=jnp.float32)
    o4 = euclidean_loss(p4, t4, min_pallas_elems=0, max_tile_rows=64)
    jax.block_until_ready(o4)
    assert jnp.allclose(o4, ref(p4, t4), rtol=1e-4, atol=1e-2), (o4, ref(p4, t4))

    print("KERNEL_OK")
</pallas_src>

<mosaic_0001>
module attributes {stable_mosaic.version = 11 : i64} {
  func.func @_l1_sum_kernel(%arg0: i32, %arg1: i32, %arg2: memref<200x128xf32, #tpu.memory_space<vmem>>, %arg3: memref<200x128xf32, #tpu.memory_space<vmem>>, %arg4: memref<8x128xf32, #tpu.memory_space<vmem>>) attributes {dimension_semantics = [#tpu.dimension_semantics<parallel>, #tpu.dimension_semantics<arbitrary>], iteration_bounds = array<i64: 1, 1>, scalar_prefetch = 0 : i64, scratch_operands = 0 : i64, tpu.core_type = #tpu.core_type<tc>, window_params = [{transform_indices = @transform_0, window_bounds = array<i64: 200, 128>}, {transform_indices = @transform_1, window_bounds = array<i64: 200, 128>}, {transform_indices = @transform_2, window_bounds = array<i64: 8, 128>}]} {
    %c0_i32 = arith.constant 0 : i32
    %0 = arith.cmpi eq, %arg1, %c0_i32 : i32
    %1 = arith.extui %0 : i1 to i32
    %c0_i32_0 = arith.constant 0 : i32
    %2 = arith.cmpi ne, %1, %c0_i32_0 : i32
    scf.if %2 {
      %cst_8 = arith.constant 0.000000e+00 : f32
      %12 = vector.broadcast %cst_8 : f32 to vector<8x128xf32>
      %c0_9 = arith.constant 0 : index
      %c0_10 = arith.constant 0 : index
      %13 = vector.load %arg4[%c0_9, %c0_10] : memref<8x128xf32, #tpu.memory_space<vmem>>, vector<8x128xf32>
      tpu.vector_store %arg4[%c0_9, %c0_10], %12 {strides = array<i32>} : memref<8x128xf32, #tpu.memory_space<vmem>>, vector<8x128xf32>,
    } else {
    }
    %c0 = arith.constant 0 : index
    %c0_1 = arith.constant 0 : index
    %3 = vector.load %arg2[%c0, %c0_1] : memref<200x128xf32, #tpu.memory_space<vmem>>, vector<200x128xf32>
    %c0_2 = arith.constant 0 : index
    %c0_3 = arith.constant 0 : index
    %4 = vector.load %arg3[%c0_2, %c0_3] : memref<200x128xf32, #tpu.memory_space<vmem>>, vector<200x128xf32>
    %5 = arith.subf %3, %4 : vector<200x128xf32>
    %6 = math.absf %5 : vector<200x128xf32>
    %c0_4 = arith.constant 0 : index
    %c0_5 = arith.constant 0 : index
    %7 = vector.load %arg4[%c0_4, %c0_5] : memref<8x128xf32, #tpu.memory_space<vmem>>, vector<8x128xf32>
    %8 = vector.shape_cast %6 : vector<200x128xf32> to vector<25x8x128xf32>
    %cst = arith.constant dense<0.000000e+00> : vector<8x128xf32>
    %9 = vector.multi_reduction <add>, %8, %cst [0] : vector<25x8x128xf32> to vector<8x128xf32>
    %10 = arith.addf %7, %9 : vector<8x128xf32>
    %c0_6 = arith.constant 0 : index
    %c0_7 = arith.constant 0 : index
    %11 = vector.load %arg4[%c0_6, %c0_7] : memref<8x128xf32, #tpu.memory_space<vmem>>, vector<8x128xf32>
    tpu.vector_store %arg4[%c0_6, %c0_7], %10 {strides = array<i32>} : memref<8x128xf32, #tpu.memory_space<vmem>>, vector<8x128xf32>,
    return
  }
  func.func @transform_0(%arg0: i32, %arg1: i32) -> (i32, i32) {
    %c1_i32 = arith.constant 1 : i32
    %0 = arith.muli %arg0, %c1_i32 : i32
    %1 = arith.addi %0, %arg1 : i32
    %c0_i32 = arith.constant 0 : i32
    %2 = arith.minsi %1, %c0_i32 : i32
    %c0_i32_0 = arith.constant 0 : i32
    %c0_i32_1 = arith.constant 0 : i32
    return %2, %c0_i32_0 : i32, i32
  }
  func.func @transform_1(%arg0: i32, %arg1: i32) -> (i32, i32) {
    %c1_i32 = arith.constant 1 : i32
    %0 = arith.muli %arg0, %c1_i32 : i32
    %1 = arith.addi %0, %arg1 : i32
    %c0_i32 = arith.constant 0 : i32
    %2 = arith.minsi %1, %c0_i32 : i32
    %c0_i32_0 = arith.constant 0 : i32
    %c0_i32_1 = arith.constant 0 : i32
    return %2, %c0_i32_0 : i32, i32
  }
  func.func @transform_2(%arg0: i32, %arg1: i32) -> (i32, i32) {
    %c0_i32 = arith.constant 0 : i32
    %c0_i32_0 = arith.constant 0 : i32
    return %arg0, %c0_i32 : i32, i32
  }
}

</mosaic_0001>

<llo_original>
// kernel: tpu_custom_call.1
$region0: #{tpu_custom_call.1}
  #allocation0 [shape = 'u32[]', space=smem, size = 0x4, offset = 0x4, fixed_abs, tag = 'smem constant byte address 0x4 - core index']
  #allocation1 [shape = 'u32[144,128]{1,0:T(1,128)}', space=vmem, size = 0x12000, scoped, tag = 'internal scratch']
  %s0 = inlined_call_operand.hbm [shape: f32[200,128], index: 0, kind: input, shape index: {}]
  %s1 = inlined_call_operand.hbm [shape: f32[200,128], index: 1, kind: input, shape index: {}]
  %s2 = inlined_call_operand.hbm [shape: f32[8,128], index: 2, kind: output, shape index: {}]
  %s3 = sld [smem:[#allocation0]]
  $region30: #{tpu_custom_call.1} parent=0
    _
  %s5 = ssub.s32 1, %s3
  %s6 = scalar_select 0, %s5, %s3
  $region1: #{tpu_custom_call.1} parent=0
    #allocation2 [shape = 'u8[102400]{0}', space=vmem, size = 0x19000, scoped, tag = 'input window, operand 0, single buffered']
    #allocation3 [shape = 's32[1]{0}', space=sflag, size = 0x4, scoped, tag = 'scoped memory for tpu_custom_call.1']
    #allocation4 [shape = 's32[1]{0}', space=sflag, size = 0x4, scoped, tag = 'scoped memory for tpu_custom_call.1']
    #allocation5 [shape = 'u8[102400]{0}', space=vmem, size = 0x19000, scoped, tag = 'input window, operand 1, single buffered']
    #allocation6 [shape = 's32[1]{0}', space=sflag, size = 0x4, scoped, tag = 'scoped memory for tpu_custom_call.1']
    #allocation7 [shape = 'u8[4096]{0}', space=vmem, size = 0x1000, scoped, tag = 'output window, operand 0, single buffered']
    %7 = vsyncpa [#allocation3], 0
    %8 = vsyncpa [#allocation6], 0
    %9 = vsyncpa [#allocation4], 0
    // Predicated region
    $region2: #{tpu_custom_call.1} parent=1 // pred_check
      _
    $region3: #{tpu_custom_call.1} parent=1 // pred_check_branch
      %11 = sbr.rel (0) target = $region5
    $region4: #{tpu_custom_call.1} parent=1 // pred_region
      %s12 = sadd.s32 0, 0
      %p13 = scmp.lt.s32.totalorder %s12, 0
      %s14 = scalar_select %p13, %s12, 0
      %s15 = smul.u32 25, %s14
      %s17 = ssub.s32 3200, 3200
      %18 = vsyncadd [#allocation3], %s17
      %s19 = smul.addr %s15, 128
      %s20 = scalar_lea.hbm %s0, %s19
      %s21 = sshll.u32 [#allocation2], 4
      %s22 = int_to_ptr.vmem [resolvable:$true] %s21
      %27 = dma.hbm_to_vmem [thread:$0]  %s20, 3200, %s22, [#allocation3], 128, 128, 8
    $region5: #{tpu_custom_call.1} parent=1 // pred_fallthru
      _
    // Predicated region
    $region6: #{tpu_custom_call.1} parent=1 // pred_check
      _
    $region7: #{tpu_custom_call.1} parent=1 // pred_check_branch
      %29 = sbr.rel (0) target = $region9
    $region8: #{tpu_custom_call.1} parent=1 // pred_region
      %s30 = sadd.s32 0, 0
      %p31 = scmp.lt.s32.totalorder %s30, 0
      %s32 = scalar_select %p31, %s30, 0
      %s33 = smul.u32 25, %s32
      %s35 = ssub.s32 3200, 3200
      %36 = vsyncadd [#allocation6], %s35
      %s37 = smul.addr %s33, 128
      %s38 = scalar_lea.hbm %s1, %s37
      %s39 = sshll.u32 [#allocation5], 4
      %s40 = int_to_ptr.vmem [resolvable:$true] %s39
      %45 = dma.hbm_to_vmem [thread:$0]  %s38, 3200, %s40, [#allocation6], 128, 128, 8
    $region9: #{tpu_custom_call.1} parent=1 // pred_fallthru
      _
    // Predicated region
    $region10: #{tpu_custom_call.1} parent=1 // pred_check
      _
    $region11: #{tpu_custom_call.1} parent=1 // pred_check_branch
      %47 = sbr.rel (0) target = $region13
    $region12: #{tpu_custom_call.1} parent=1 // pred_region
      %48 = dma.done [#allocation3], 3200
    $region13: #{tpu_custom_call.1} parent=1 // pred_fallthru
      _
    // Predicated region
    $region14: #{tpu_custom_call.1} parent=1 // pred_check
      _
    $region15: #{tpu_custom_call.1} parent=1 // pred_check_branch
      %50 = sbr.rel (0) target = $region17
    $region16: #{tpu_custom_call.1} parent=1 // pred_region
      %51 = dma.done [#allocation6], 3200
    $region17: #{tpu_custom_call.1} parent=1 // pred_fallthru
      _
    %s52 = sadd.s32 0, 0
    %p53 = scmp.lt.s32.totalorder %s52, 0
    %s54 = scalar_select %p53, %s52, 0
    %s55 = smul.u32 25, %s54
    %s56 = sadd.s32 0, 0
    %p57 = scmp.lt.s32.totalorder %s56, 0
    %s58 = scalar_select %p57, %s56, 0
    %s59 = smul.u32 25, %s58
    %p60 = scmp.eq.s32.totalorder 0, 0
    // Predicated region
    $region18: #{tpu_custom_call.1} parent=1 // pred_check
      %p61 = pneg %p60
    $region19: #{tpu_custom_call.1} parent=1 // pred_check_branch
      %63 = sbr.rel (%p61) target = $region21
    $region20: #{tpu_custom_call.1} parent=1 // pred_region
      %64 = vst [vmem:[#allocation7] sm:$0xff] 0.0
    $region21: #{tpu_custom_call.1} parent=1 // pred_fallthru
      _
    %v65 = vld [vmem:[#allocation2] sm:$0xff]
    %v66 = vld [vmem:[#allocation2 + $0x8] sm:$0xff]
    %v67 = vld [vmem:[#allocation2 + $0x10] sm:$0xff]
    %v68 = vld [vmem:[#allocation2 + $0x18] sm:$0xff]
    %v69 = vld [vmem:[#allocation2 + $0x20] sm:$0xff]
    %v70 = vld [vmem:[#allocation2 + $0x28] sm:$0xff]
    %v71 = vld [vmem:[#allocation2 + $0x30] sm:$0xff]
    %v72 = vld [vmem:[#allocation2 + $0x38] sm:$0xff]
    %v73 = vld [vmem:[#allocation2 + $0x40] sm:$0xff]
    %v74 = vld [vmem:[#allocation2 + $0x48] sm:$0xff]
    %v75 = vld [vmem:[#allocation2 + $0x50] sm:$0xff]
    %v76 = vld [vmem:[#allocation2 + $0x58] sm:$0xff]
    %v77 = vld [vmem:[#allocation2 + $0x60] sm:$0xff]
    %v78 = vld [vmem:[#allocation2 + $0x68] sm:$0xff]
    %v79 = vld [vmem:[#allocation2 + $0x70] sm:$0xff]
    %v80 = vld [vmem:[#allocation2 + $0x78] sm:$0xff]
    %v81 = vld [vmem:[#allocation2 + $0x80] sm:$0xff]
    %v82 = vld [vmem:[#allocation2 + $0x88] sm:$0xff]
    %v83 = vld [vmem:[#allocation2 + $0x90] sm:$0xff]
    %v84 = vld [vmem:[#allocation2 + $0x98] sm:$0xff]
    %v85 = vld [vmem:[#allocation2 + $0xa0] sm:$0xff]
    %v86 = vld [vmem:[#allocation2 + $0xa8] sm:$0xff]
    %v87 = vld [vmem:[#allocation2 + $0xb0] sm:$0xff]
    %v88 = vld [vmem:[#allocation2 + $0xb8] sm:$0xff]
    %v89 = vld [vmem:[#allocation2 + $0xc0] sm:$0xff]
    %v90 = vld [vmem:[#allocation5] sm:$0xff]
    %v91 = vld [vmem:[#allocation5 + $0x8] sm:$0xff]
    %v92 = vld [vmem:[#allocation5 + $0x10] sm:$0xff]
    %v93 = vld [vmem:[#allocation5 + $0x18] sm:$0xff]
    %v94 = vld [vmem:[#allocation5 + $0x20] sm:$0xff]
    %v95 = vld [vmem:[#allocation5 + $0x28] sm:$0xff]
    %v96 = vld [vmem:[#allocation5 + $0x30] sm:$0xff]
    %v97 = vld [vmem:[#allocation5 + $0x38] sm:$0xff]
    %v98 = vld [vmem:[#allocation5 + $0x40] sm:$0xff]
    %v99 = vld [vmem:[#allocation5 + $0x48] sm:$0xff]
    %v100 = vld [vmem:[#allocation5 + $0x50] sm:$0xff]
    %v101 = vld [vmem:[#allocation5 + $0x58] sm:$0xff]
    %v102 = vld [vmem:[#allocation5 + $0x60] sm:$0xff]
    %v103 = vld [vmem:[#allocation5 + $0x68] sm:$0xff]
    %v104 = vld [vmem:[#allocation5 + $0x70] sm:$0xff]
    %v105 = vld [vmem:[#allocation5 + $0x78] sm:$0xff]
    %v106 = vld [vmem:[#allocation5 + $0x80] sm:$0xff]
    %v107 = vld [vmem:[#allocation5 + $0x88] sm:$0xff]
    %v108 = vld [vmem:[#allocation5 + $0x90] sm:$0xff]
    %v109 = vld [vmem:[#allocation5 + $0x98] sm:$0xff]
    %v110 = vld [vmem:[#allocation5 + $0xa0] sm:$0xff]
    %v111 = vld [vmem:[#allocation5 + $0xa8] sm:$0xff]
    %v112 = vld [vmem:[#allocation5 + $0xb0] sm:$0xff]
    %v113 = vld [vmem:[#allocation5 + $0xb8] sm:$0xff]
    %v114 = vld [vmem:[#allocation5 + $0xc0] sm:$0xff]
    %v115 = vsub.f32 %v65, %v90
    %v116 = vsub.f32 %v66, %v91
    %v117 = vsub.f32 %v67, %v92
    %v118 = vsub.f32 %v68, %v93
    %v119 = vsub.f32 %v69, %v94
    %v120 = vsub.f32 %v70, %v95
    %v121 = vsub.f32 %v71, %v96
    %v122 = vsub.f32 %v72, %v97
    %v123 = vsub.f32 %v73, %v98
    %v124 = vsub.f32 %v74, %v99
    %v125 = vsub.f32 %v75, %v100
    %v126 = vsub.f32 %v76, %v101
    %v127 = vsub.f32 %v77, %v102
    %v128 = vsub.f32 %v78, %v103
    %v129 = vsub.f32 %v79, %v104
    %v130 = vsub.f32 %v80, %v105
    %v131 = vsub.f32 %v81, %v106
    %v132 = vsub.f32 %v82, %v107
    %v133 = vsub.f32 %v83, %v108
    %v134 = vsub.f32 %v84, %v109
    %v135 = vsub.f32 %v85, %v110
    %v136 = vsub.f32 %v86, %v111
    %v137 = vsub.f32 %v87, %v112
    %v138 = vsub.f32 %v88, %v113
    %v139 = vsub.f32 %v89, %v114
    %v140 = vand.u32 2147483647, %v115
    %v141 = vand.u32 2147483647, %v116
    %v142 = vand.u32 2147483647, %v117
    %v143 = vand.u32 2147483647, %v118
    %v144 = vand.u32 2147483647, %v119
    %v145 = vand.u32 2147483647, %v120
    %v146 = vand.u32 2147483647, %v121
    %v147 = vand.u32 2147483647, %v122
    %v148 = vand.u32 2147483647, %v123
    %v149 = vand.u32 2147483647, %v124
    %v150 = vand.u32 2147483647, %v125
    %v151 = vand.u32 2147483647, %v126
    %v152 = vand.u32 2147483647, %v127
    %v153 = vand.u32 2147483647, %v128
    %v154 = vand.u32 2147483647, %v129
    %v155 = vand.u32 2147483647, %v130
    %v156 = vand.u32 2147483647, %v131
    %v157 = vand.u32 2147483647, %v132
    %v158 = vand.u32 2147483647, %v133
    %v159 = vand.u32 2147483647, %v134
    %v160 = vand.u32 2147483647, %v135
    %v161 = vand.u32 2147483647, %v136
    %v162 = vand.u32 2147483647, %v137
    %v163 = vand.u32 2147483647, %v138
    %v164 = vand.u32 2147483647, %v139
    %v165 = vld [vmem:[#allocation7] sm:$0xff]
    %v166 = vadd.f32 %v140, %v141
    %v167 = vadd.f32 %v166, %v142
    %v168 = vadd.f32 %v167, %v143
    %v169 = vadd.f32 %v168, %v144
    %v170 = vadd.f32 %v169, %v145
    %v171 = vadd.f32 %v170, %v146
    %v172 = vadd.f32 %v171, %v147
    %v173 = vadd.f32 %v172, %v148
    %v174 = vadd.f32 %v173, %v149
    %v175 = vadd.f32 %v174, %v150
    %v176 = vadd.f32 %v175, %v151
    %v177 = vadd.f32 %v176, %v152
    %v178 = vadd.f32 %v177, %v153
    %v179 = vadd.f32 %v178, %v154
    %v180 = vadd.f32 %v179, %v155
    %v181 = vadd.f32 %v180, %v156
    %v182 = vadd.f32 %v181, %v157
    %v183 = vadd.f32 %v182, %v158
    %v184 = vadd.f32 %v183, %v159
    %v185 = vadd.f32 %v184, %v160
    %v186 = vadd.f32 %v185, %v161
    %v187 = vadd.f32 %v186, %v162
    %v188 = vadd.f32 %v187, %v163
    %v189 = vadd.f32 %v188, %v164
    %v190 = vadd.f32 %v165, %v189
    %191 = vst [vmem:[#allocation7] sm:$0xff] %v190
    // Predicated region
    $region22: #{tpu_custom_call.1} parent=1 // pred_check
      _
    $region23: #{tpu_custom_call.1} parent=1 // pred_check_branch
      %193 = sbr.rel (0) target = $region25
    $region24: #{tpu_custom_call.1} parent=1 // pred_region
      %s195 = ssub.s32 128, 128
      %196 = vsyncadd [#allocation4], %s195
      %s198 = sshll.u32 [#allocation7], 4
      %s199 = int_to_ptr.vmem [resolvable:$true] %s198
      %201 = dma.vmem_to_hbm [thread:$0]  %s199, 128, %s2, [#allocation4]
    $region25: #{tpu_custom_call.1} parent=1 // pred_fallthru
      _
    // Predicated region
    $region26: #{tpu_custom_call.1} parent=1 // pred_check
      _
    $region27: #{tpu_custom_call.1} parent=1 // pred_check_branch
      %203 = sbr.rel (0) target = $region29
    $region28: #{tpu_custom_call.1} parent=1 // pred_region
      %204 = dma.done [#allocation4], 128
    $region29: #{tpu_custom_call.1} parent=1 // pred_fallthru
      _
    %205 = vsyncpa [#allocation3], 1
    %206 = vsyncpa [#allocation6], 1
    %207 = vsyncpa [#allocation4], 1

</llo_original>
